<compile_context>
chip_gen: v7x
topology: tpu7x:2x2x1
jax: 0.10.0
libtpu: 0.0.40
codegen_flags: <defaults>
</compile_context>

<pallas_src>
import functools

import jax
import jax.numpy as jnp
from jax import lax
from jax.experimental import pallas as pl
from jax.experimental.pallas import tpu as pltpu

_EPS = 1e-8  # torch.nn.CosineSimilarity default eps


def _vmem_capacity_bytes():
    """Physical VMEM per TensorCore; conservative (v7x, 64 MiB) fallback."""
    try:
        info = pltpu.get_tpu_info()
        cap = getattr(info, "vmem_capacity_bytes", None)
        if cap:
            return int(cap)
    except Exception:
        pass
    return 64 << 20


def _cos_kernel_flat(a_ref, b_ref, o_ref, acc_ref, *, m_total, tile_m, needs_mask):
    """Blocks are (C, tile_m): channels on sublanes, spatial on lanes."""
    j = pl.program_id(1)
    nj = pl.num_programs(1)

    @pl.when(j == 0)
    def _init():
        acc_ref[...] = jnp.zeros_like(acc_ref)

    a = a_ref[...].astype(jnp.float32)            # (C, tile_m)
    b = b_ref[...].astype(jnp.float32)
    dot = jnp.sum(a * b, axis=0, keepdims=True)   # (1, tile_m)
    sa = jnp.sum(a * a, axis=0, keepdims=True)
    sb = jnp.sum(b * b, axis=0, keepdims=True)
    # torch semantics: cos = dot * rsqrt(clamp_min(||a||^2 * ||b||^2, eps^2))
    cos = dot * lax.rsqrt(jnp.maximum(sa * sb, _EPS * _EPS))

    if needs_mask:
        @pl.when(j < nj - 1)
        def _acc_full():
            acc_ref[...] += cos

        @pl.when(j == nj - 1)
        def _acc_tail():  # mask garbage lanes of the ragged final tile only
            col = lax.broadcasted_iota(jnp.int32, (1, tile_m), 1) + j * tile_m
            acc_ref[...] += jnp.where(col < m_total, cos, 0.0)
    else:
        acc_ref[...] += cos

    @pl.when(j == nj - 1)
    def _finalize():
        o_ref[0] = jnp.sum(acc_ref[...], keepdims=True)   # (1, 1)


def _cos_kernel_packed(a_ref, b_ref, o_ref, acc_ref, *, r_total, tile_r, needs_mask):
    """Blocks are (C, tile_r, 128): full vreg packing independent of C."""
    j = pl.program_id(1)
    nj = pl.num_programs(1)

    @pl.when(j == 0)
    def _init():
        acc_ref[...] = jnp.zeros_like(acc_ref)

    a = a_ref[...].astype(jnp.float32)            # (C, tile_r, 128)
    b = b_ref[...].astype(jnp.float32)
    dot = jnp.sum(a * b, axis=0)                  # (tile_r, 128)
    sa = jnp.sum(a * a, axis=0)
    sb = jnp.sum(b * b, axis=0)
    cos = dot * lax.rsqrt(jnp.maximum(sa * sb, _EPS * _EPS))

    if needs_mask:
        @pl.when(j < nj - 1)
        def _acc_full():
            acc_ref[...] += cos

        @pl.when(j == nj - 1)
        def _acc_tail():  # mask garbage rows of the ragged final tile only
            row = lax.broadcasted_iota(jnp.int32, (tile_r, 128), 0) + j * tile_r
            acc_ref[...] += jnp.where(row < r_total, cos, 0.0)
    else:
        acc_ref[...] += cos

    @pl.when(j == nj - 1)
    def _finalize():
        o_ref[0] = jnp.sum(acc_ref[...], keepdims=True)   # (1, 1)


def cos_similarity_loss(a, b, *, tile_lanes=None):
    """mean(1 - cosine_similarity(a, b, dim=1)), matching the torch module."""
    assert a.shape == b.shape, "a and b must have identical shapes"
    assert a.ndim >= 2, "need a channel axis (dim=1) to reduce over"
    B, C = a.shape[0], a.shape[1]
    M = 1
    for d in a.shape[2:]:
        M *= d
    M = max(M, 1)

    itemsize = jnp.dtype(a.dtype).itemsize

    # ---- per-generation VMEM budget -----------------------------------------
    # ~48 MiB scoped limit on v7x (64 MiB physical), ~96 MiB on v5e/v6e (128 MiB)
    vmem_cap_limit = min((_vmem_capacity_bytes() * 3) // 4, 96 << 20)
    budget = vmem_cap_limit - (8 << 20)  # headroom for compiler-internal scratch

    # Per-lane VMEM footprint: 2 inputs x 2 pipeline buffers, worst-case f32
    # working set (products/reductions), f32 upcast copies for sub-f32 inputs,
    # and the accumulator/partials.
    per_lane = (2 * 2 * C * itemsize
                + 3 * C * 4
                + (2 * C * 4 if itemsize < 4 else 0)
                + 16)
    if tile_lanes is None:
        tile_lanes = max(budget // per_lane, 128)   # no artificial upper cap
    tile_lanes = int(tile_lanes)

    use_packed = (M % 128 == 0) and (M >= 128)

    if use_packed:
        R = M // 128
        a_v = a.reshape(B, C, R, 128)   # view-only reshape, no extra HBM pass
        b_v = b.reshape(B, C, R, 128)
        tile_r = max(1, tile_lanes // 128)
        if tile_r >= R:
            tile_r = R                              # full dim: any size allowed
        else:
            tile_r = max(8, (tile_r // 8) * 8)      # partial blocks: multiple of 8
        num_tiles = pl.cdiv(R, tile_r)
        needs_mask = (R % tile_r) != 0
        actual_lanes = tile_r * 128

        kernel = functools.partial(_cos_kernel_packed, r_total=R, tile_r=tile_r,
                                   needs_mask=needs_mask)
        in_specs = [
            pl.BlockSpec((pl.Squeezed(), C, tile_r, 128), lambda bi, ji: (bi, 0, ji, 0)),
            pl.BlockSpec((pl.Squeezed(), C, tile_r, 128), lambda bi, ji: (bi, 0, ji, 0)),
        ]
        scratch = [pltpu.VMEM((tile_r, 128), jnp.float32)]
        operands = (a_v, b_v)
    else:
        a_v = a.reshape(B, C, M)
        b_v = b.reshape(B, C, M)
        if tile_lanes >= M:
            tile_m = M                              # single full-extent tile
            needs_mask = False
        else:
            tile_m = max(128, (tile_lanes // 128) * 128)
            needs_mask = (M % tile_m) != 0
        num_tiles = pl.cdiv(M, tile_m)
        actual_lanes = tile_m

        kernel = functools.partial(_cos_kernel_flat, m_total=M, tile_m=tile_m,
                                   needs_mask=needs_mask)
        in_specs = [
            pl.BlockSpec((pl.Squeezed(), C, tile_m), lambda bi, ji: (bi, 0, ji)),
            pl.BlockSpec((pl.Squeezed(), C, tile_m), lambda bi, ji: (bi, 0, ji)),
        ]
        scratch = [pltpu.VMEM((1, tile_m), jnp.float32)]
        operands = (a_v, b_v)

    vmem_needed = per_lane * actual_lanes
    vmem_limit = int(min(vmem_cap_limit, max(32 << 20, vmem_needed + (4 << 20))))

    cost = pl.CostEstimate(
        flops=int(8 * B * C * M),
        transcendentals=int(B * M),
        bytes_accessed=int(2 * B * C * M * itemsize + 4 * B),
    )

    partials = pl.pallas_call(
        kernel,
        out_shape=jax.ShapeDtypeStruct((B, 1, 1), jnp.float32),
        grid_spec=pltpu.PrefetchScalarGridSpec(
            num_scalar_prefetch=0,
            grid=(B, num_tiles),
            in_specs=in_specs,
            out_specs=pl.BlockSpec((1, 1, 1), lambda bi, ji: (bi, 0, 0)),
            scratch_shapes=scratch,
        ),
        compiler_params=pltpu.CompilerParams(
            dimension_semantics=("parallel", "arbitrary"),
            vmem_limit_bytes=vmem_limit,
        ),
        cost_estimate=cost,
    )(*operands)

    total_n = B * M
    # partials[b] = sum_m cos(a[b, :, m], b[b, :, m]);  mean(1 - cos) = 1 - sum/N
    return (1.0 - jnp.sum(partials) / total_n).astype(jnp.float32)


def _reference(a, b):
    a = a.astype(jnp.float32)
    b = b.astype(jnp.float32)
    B, C = a.shape[0], a.shape[1]
    a = a.reshape(B, C, -1)
    b = b.reshape(B, C, -1)
    dot = jnp.sum(a * b, axis=1)
    sa = jnp.sum(a * a, axis=1)
    sb = jnp.sum(b * b, axis=1)
    cos = dot / jnp.sqrt(jnp.maximum(sa * sb, _EPS * _EPS))
    return jnp.mean(1.0 - cos)


if __name__ == "__main__":
    key = jax.random.PRNGKey(0)
    k1, k2, k3, k4 = jax.random.split(key, 4)

    # NCHW inputs, cosine similarity over channel axis (dim=1) — packed path.
    a = jax.random.normal(k1, (2, 4, 16, 16), dtype=jnp.float32)
    b = jax.random.normal(k2, (2, 4, 16, 16), dtype=jnp.float32)
    loss = jax.block_until_ready(cos_similarity_loss(a, b))
    ref = _reference(a, b)
    assert jnp.allclose(loss, ref, atol=1e-5, rtol=1e-5), (loss, ref)

    # Non-128-multiple spatial size with a forced small tile — flat path + ragged
    # final tile mask.
    c = jax.random.normal(k3, (2, 8, 6, 25), dtype=jnp.float32)
    d = jax.random.normal(k4, (2, 8, 6, 25), dtype=jnp.float32)
    loss2 = jax.block_until_ready(cos_similarity_loss(c, d, tile_lanes=128))
    ref2 = _reference(c, d)
    assert jnp.allclose(loss2, ref2, atol=1e-5, rtol=1e-5), (loss2, ref2)

    print("KERNEL_OK")
</pallas_src>

<mosaic_0001>
module attributes {stable_mosaic.version = 11 : i64} {
  func.func @_cos_kernel_packed(%arg0: i32, %arg1: i32, %arg2: memref<1x4x2x128xf32, #tpu.memory_space<vmem>>, %arg3: memref<1x4x2x128xf32, #tpu.memory_space<vmem>>, %arg4: memref<1x1x1xf32, #tpu.memory_space<vmem>>, %arg5: memref<2x128xf32, #tpu.memory_space<vmem>>) attributes {dimension_semantics = [#tpu.dimension_semantics<parallel>, #tpu.dimension_semantics<arbitrary>], iteration_bounds = array<i64: 2, 1>, scalar_prefetch = 0 : i64, scratch_operands = 1 : i64, tpu.core_type = #tpu.core_type<tc>, window_params = [{transform_indices = @transform_0, window_bounds = array<i64: 1, 4, 2, 128>}, {transform_indices = @transform_1, window_bounds = array<i64: 1, 4, 2, 128>}, {transform_indices = @transform_2, window_bounds = array<i64: 1, 1, 1>}]} {
    %c0_i32 = arith.constant 0 : i32
    %0 = arith.cmpi eq, %arg1, %c0_i32 : i32
    %1 = arith.extui %0 : i1 to i32
    %c0_i32_0 = arith.constant 0 : i32
    %2 = arith.cmpi ne, %1, %c0_i32_0 : i32
    scf.if %2 {
      %cst_17 = arith.constant 0.000000e+00 : f32
      %24 = vector.broadcast %cst_17 : f32 to vector<2x128xf32>
      %c0_18 = arith.constant 0 : index
      %c0_19 = arith.constant 0 : index
      %25 = vector.load %arg5[%c0_18, %c0_19] : memref<2x128xf32, #tpu.memory_space<vmem>>, vector<2x128xf32>
      tpu.vector_store %arg5[%c0_18, %c0_19], %24 {strides = array<i32>} : memref<2x128xf32, #tpu.memory_space<vmem>>, vector<2x128xf32>,
    } else {
    }
    %c0 = arith.constant 0 : index
    %c0_1 = arith.constant 0 : index
    %c0_2 = arith.constant 0 : index
    %c0_3 = arith.constant 0 : index
    %3 = vector.load %arg2[%c0, %c0_1, %c0_2, %c0_3] : memref<1x4x2x128xf32, #tpu.memory_space<vmem>>, vector<1x4x2x128xf32>
    %4 = vector.shape_cast %3 : vector<1x4x2x128xf32> to vector<4x2x128xf32>
    %c0_4 = arith.constant 0 : index
    %c0_5 = arith.constant 0 : index
    %c0_6 = arith.constant 0 : index
    %c0_7 = arith.constant 0 : index
    %5 = vector.load %arg3[%c0_4, %c0_5, %c0_6, %c0_7] : memref<1x4x2x128xf32, #tpu.memory_space<vmem>>, vector<1x4x2x128xf32>
    %6 = vector.shape_cast %5 : vector<1x4x2x128xf32> to vector<4x2x128xf32>
    %7 = arith.mulf %4, %6 : vector<4x2x128xf32>
    %cst = arith.constant dense<0.000000e+00> : vector<2x128xf32>
    %8 = vector.multi_reduction <add>, %7, %cst [0] : vector<4x2x128xf32> to vector<2x128xf32>
    %9 = arith.mulf %4, %4 : vector<4x2x128xf32>
    %cst_8 = arith.constant dense<0.000000e+00> : vector<2x128xf32>
    %10 = vector.multi_reduction <add>, %9, %cst_8 [0] : vector<4x2x128xf32> to vector<2x128xf32>
    %11 = arith.mulf %6, %6 : vector<4x2x128xf32>
    %cst_9 = arith.constant dense<0.000000e+00> : vector<2x128xf32>
    %12 = vector.multi_reduction <add>, %11, %cst_9 [0] : vector<4x2x128xf32> to vector<2x128xf32>
    %13 = arith.mulf %10, %12 : vector<2x128xf32>
    %cst_10 = arith.constant 1.000000e-16 : f32
    %14 = vector.broadcast %cst_10 : f32 to vector<2x128xf32>
    %15 = arith.maximumf %13, %14 : vector<2x128xf32>
    %16 = math.rsqrt %15 : vector<2x128xf32>
    %17 = arith.mulf %8, %16 : vector<2x128xf32>
    %c0_11 = arith.constant 0 : index
    %c0_12 = arith.constant 0 : index
    %18 = vector.load %arg5[%c0_11, %c0_12] : memref<2x128xf32, #tpu.memory_space<vmem>>, vector<2x128xf32>
    %19 = arith.addf %18, %17 : vector<2x128xf32>
    %c0_13 = arith.constant 0 : index
    %c0_14 = arith.constant 0 : index
    %20 = vector.load %arg5[%c0_13, %c0_14] : memref<2x128xf32, #tpu.memory_space<vmem>>, vector<2x128xf32>
    tpu.vector_store %arg5[%c0_13, %c0_14], %19 {strides = array<i32>} : memref<2x128xf32, #tpu.memory_space<vmem>>, vector<2x128xf32>,
    %c0_i32_15 = arith.constant 0 : i32
    %21 = arith.cmpi eq, %arg1, %c0_i32_15 : i32
    %22 = arith.extui %21 : i1 to i32
    %c0_i32_16 = arith.constant 0 : i32
    %23 = arith.cmpi ne, %22, %c0_i32_16 : i32
    scf.if %23 {
      %c0_17 = arith.constant 0 : index
      %c0_18 = arith.constant 0 : index
      %24 = vector.load %arg5[%c0_17, %c0_18] : memref<2x128xf32, #tpu.memory_space<vmem>>, vector<2x128xf32>
      %25 = vector.shape_cast %24 : vector<2x128xf32> to vector<1x2x128xf32>
      %cst_19 = arith.constant dense<0.000000e+00> : vector<1xf32>
      %26 = vector.multi_reduction <add>, %25, %cst_19 [1, 2] : vector<1x2x128xf32> to vector<1xf32>
      %27 = vector.shape_cast %26 : vector<1xf32> to vector<1x1x1xf32>
      %28 = vector.extract %27[0, 0, 0] : f32 from vector<1x1x1xf32>
      %29 = vector.broadcast %28 : f32 to vector<1x1xf32>
      %c0_20 = arith.constant 0 : index
      %c0_21 = arith.constant 0 : index
      %c0_22 = arith.constant 0 : index
      %30 = vector.load %arg4[%c0_20, %c0_21, %c0_22] : memref<1x1x1xf32, #tpu.memory_space<vmem>>, vector<1x1x1xf32>
      %31 = vector.shape_cast %30 : vector<1x1x1xf32> to vector<1x1xf32>
      %32 = vector.shape_cast %29 : vector<1x1xf32> to vector<1x1x1xf32>
      tpu.vector_store %arg4[%c0_20, %c0_21, %c0_22], %32 {strides = array<i32>} : memref<1x1x1xf32, #tpu.memory_space<vmem>>, vector<1x1x1xf32>,
    } else {
    }
    return
  }
  func.func @transform_0(%arg0: i32, %arg1: i32) -> (i32, i32, i32, i32) {
    %c0_i32 = arith.constant 0 : i32
    %c0_i32_0 = arith.constant 0 : i32
    %c0_i32_1 = arith.constant 0 : i32
    return %arg0, %c0_i32, %arg1, %c0_i32_0 : i32, i32, i32, i32
  }
  func.func @transform_1(%arg0: i32, %arg1: i32) -> (i32, i32, i32, i32) {
    %c0_i32 = arith.constant 0 : i32
    %c0_i32_0 = arith.constant 0 : i32
    %c0_i32_1 = arith.constant 0 : i32
    return %arg0, %c0_i32, %arg1, %c0_i32_0 : i32, i32, i32, i32
  }
  func.func @transform_2(%arg0: i32, %arg1: i32) -> (i32, i32, i32) {
    %c0_i32 = arith.constant 0 : i32
    %c0_i32_0 = arith.constant 0 : i32
    %c0_i32_1 = arith.constant 0 : i32
    return %arg0, %c0_i32, %c0_i32_0 : i32, i32, i32
  }
}

</mosaic_0001>

<llo_original>
// kernel: tpu_custom_call.1
$region0: #{tpu_custom_call.1}
  #allocation0 [shape = 'u32[]', space=smem, size = 0x4, offset = 0x4, fixed_abs, tag = 'smem constant byte address 0x4 - core index']
  #allocation1 [shape = 'u32[144,128]{1,0:T(1,128)}', space=vmem, size = 0x12000, scoped, tag = 'internal scratch']
  #allocation2 [shape = 'f32[2,128]{1,0:T(2,128)}', space=vmem, size = 0x400, scoped, tag = 'scratch operand']
  %s0 = inlined_call_operand.hbm [shape: f32[2,4,2,128], index: 0, kind: input, shape index: {}]
  %s1 = inlined_call_operand.hbm [shape: f32[2,4,2,128], index: 1, kind: input, shape index: {}]
  %s2 = inlined_call_operand.vmem [shape: f32[2,1,1], index: 2, kind: output, shape index: {}]
  %s3 = sld [smem:[#allocation0]]
  $region57: #{tpu_custom_call.1} parent=0
    _
  %s5 = ssub.s32 1, %s3
  %s6 = scalar_select 0, %s5, %s3
  $region1: #{tpu_custom_call.1} parent=0
    #allocation3 [shape = 'u8[8192]{0}', space=vmem, size = 0x2000, scoped, tag = 'input window, operand 0']
    #allocation4 [shape = 's32[2]{0}', space=sflag, size = 0x8, scoped, tag = 'scoped memory for tpu_custom_call.1']
    #allocation5 [shape = 'u8[8192]{0}', space=vmem, size = 0x2000, scoped, tag = 'input window, operand 1']
    #allocation6 [shape = 's32[2]{0}', space=sflag, size = 0x8, scoped, tag = 'scoped memory for tpu_custom_call.1']
    %7 = vsyncpa [#allocation4], 0
    %s8 = scalar_lea.sflag [#allocation4], 1
    %9 = vsyncpa %s8, 0
    %10 = vsyncpa [#allocation6], 0
    %s11 = scalar_lea.sflag [#allocation6], 1
    %12 = vsyncpa %s11, 0
    loop: start=0, step=1, limit=4
    $region2: #{tpu_custom_call.1} parent=1 // loop_pre_header
      _
    $region3: #{tpu_custom_call.1} parent=1 // loop_header
      %s14 = sphi 0, %s18
      %p15 = scmp.ge.s32.totalorder %s14, 4
      %s21 = sphi 0, %s33
      %s22 = sphi 0, %s29
      %s23 = sphi 0, %s21
      %s24 = sphi 0, %s22
      %s25 = sphi 0, %s23
      %s26 = sphi 0, %s24
      %s38 = sphi 0, %s40
      %s41 = sphi 0, %s38
      %s42 = sphi 0, %s41
      %s58 = sphi 0, %s42
      %s66 = sphi 0, %s68
      %s69 = sphi 0, %s66
      %s70 = sphi 0, %s69
      %s86 = sphi 0, %s70
      %s92 = sphi 0, %s94
      %s95 = sphi 0, %s92
      %s96 = sphi 0, %s95
      %s112 = sphi 0, %s96
    $region4: #{tpu_custom_call.1} parent=1 // loop_header_branch
      %17 = sbr.rel (%p15) target = $region8
    $region5: #{tpu_custom_call.1} parent=1 // loop_body
      %s19 = ssub.s32 %s14, 1
      %s20 = ssub.s32 %s14, 2
      %s27 = sadd.s32 1, %s22
      %p28 = scmp.ge.s32.totalorder %s27, 1
      %s29 = scalar_select %p28, 0, %s27
      %s30 = sadd.s32 1, %s21
      %s31 = scalar_select %p28, %s30, %s21
      %p32 = scmp.ge.s32.totalorder %s31, 2
      %s33 = scalar_select %p32, 0, %s31
      %s34 = ssub.s32 %s21, %s33
      %s35 = ssub.s32 %s22, %s29
      %s36 = sor.u32 %s34, %s35
      %p37 = scmp.eq.s32.totalorder %s36, 0
      %s39 = sadd.s32 %s38, 1
      %s40 = scalar_select %p37, %s38, %s39
      %p43 = pneg %p37
      %p44 = scmp.eq.s32.totalorder %s14, 1
      %p45 = por %p43, %p44
      %p46 = scmp.ne.s32.totalorder %s38, %s41
      %p47 = scmp.eq.s32.totalorder %s14, 0
      %p48 = por %p46, %p47
      %p49 = scmp.ne.s32.totalorder %s38, %s41
      %p50 = scmp.eq.s32.totalorder %s19, 1
      %p51 = por %p49, %p50
      %p52 = scmp.ne.s32.totalorder %s41, %s42
      %p53 = scmp.eq.s32.totalorder %s19, 0
      %p54 = por %p52, %p53
      %p55 = scmp.ne.s32.totalorder %s41, %s42
      %p56 = scmp.eq.s32.totalorder %s20, 1
      %p57 = por %p55, %p56
      %p59 = scmp.ne.s32.totalorder %s42, %s58
      %p60 = scmp.eq.s32.totalorder %s20, 0
      %p61 = por %p59, %p60
      %s62 = ssub.s32 %s21, %s33
      %s63 = ssub.s32 %s22, %s29
      %s64 = sor.u32 %s62, %s63
      %p65 = scmp.eq.s32.totalorder %s64, 0
      %s67 = sadd.s32 %s66, 1
      %s68 = scalar_select %p65, %s66, %s67
      %p71 = pneg %p65
      %p72 = scmp.eq.s32.totalorder %s14, 1
      %p73 = por %p71, %p72
      %p74 = scmp.ne.s32.totalorder %s66, %s69
      %p75 = scmp.eq.s32.totalorder %s14, 0
      %p76 = por %p74, %p75
      %p77 = scmp.ne.s32.totalorder %s66, %s69
      %p78 = scmp.eq.s32.totalorder %s19, 1
      %p79 = por %p77, %p78
      %p80 = scmp.ne.s32.totalorder %s69, %s70
      %p81 = scmp.eq.s32.totalorder %s19, 0
      %p82 = por %p80, %p81
      %p83 = scmp.ne.s32.totalorder %s69, %s70
      %p84 = scmp.eq.s32.totalorder %s20, 1
      %p85 = por %p83, %p84
      %p87 = scmp.ne.s32.totalorder %s70, %s86
      %p88 = scmp.eq.s32.totalorder %s20, 0
      %p89 = por %p87, %p88
      %s90 = ssub.s32 %s21, %s33
      %p91 = scmp.eq.s32.totalorder %s90, 0
      %s93 = sadd.s32 %s92, 1
      %s94 = scalar_select %p91, %s92, %s93
      %p97 = pneg %p91
      %p98 = scmp.eq.s32.totalorder %s14, 1
      %p99 = por %p97, %p98
      %p100 = scmp.ne.s32.totalorder %s92, %s95
      %p101 = scmp.eq.s32.totalorder %s14, 0
      %p102 = por %p100, %p101
      %p103 = scmp.ne.s32.totalorder %s92, %s95
      %p104 = scmp.eq.s32.totalorder %s19, 1
      %p105 = por %p103, %p104
      %p106 = scmp.ne.s32.totalorder %s95, %s96
      %p107 = scmp.eq.s32.totalorder %s19, 0
      %p108 = por %p106, %p107
      %p109 = scmp.ne.s32.totalorder %s95, %s96
      %p110 = scmp.eq.s32.totalorder %s20, 1
      %p111 = por %p109, %p110
      %p113 = scmp.ne.s32.totalorder %s96, %s112
      %p114 = scmp.eq.s32.totalorder %s20, 0
      %p115 = por %p113, %p114
      %p116 = scmp.le.s32.totalorder 1, %s14
      %p117 = scmp.lt.s32.totalorder %s14, 3
      %p118 = pnand %p116, %p117
      %p119 = pneg %p118
      // Predicated region
      $region9: #{tpu_custom_call.1} parent=5 // pred_check
        _
      $region10: #{tpu_custom_call.1} parent=5 // pred_check_branch
        %121 = sbr.rel (%p118) target = $region12
      $region11: #{tpu_custom_call.1} parent=5 // pred_region
        %s122 = ssub.s32 %s14, 1
      $region12: #{tpu_custom_call.1} parent=5 // pred_fallthru
        _
      %p123 = scmp.lt.s32.totalorder %s14, 2
      // Predicated region
      $region13: #{tpu_custom_call.1} parent=5 // pred_check
        %p124 = pneg %p123
      $region14: #{tpu_custom_call.1} parent=5 // pred_check_branch
        %126 = sbr.rel (%p124) target = $region16
      $region15: #{tpu_custom_call.1} parent=5 // pred_region
        // Predicated region
        $region17: #{tpu_custom_call.1} parent=15 // pred_check
          %p127 = pneg %p48
        $region18: #{tpu_custom_call.1} parent=15 // pred_check_branch
          %129 = sbr.rel (%p127) target = $region20
        $region19: #{tpu_custom_call.1} parent=15 // pred_region
          %s130 = sand.u32 %s38, 1
          %s131 = scalar_lea.sflag [#allocation4], %s130
          %s132 = sand.u32 %s38, 1
          %s133 = smul.addr %s132, 8
          %s134 = scalar_lea.vmem [#allocation3], %s133
          %s136 = ssub.s32 128, 128
          %137 = vsyncadd %s131, %s136
          %s138 = smul.addr %s21, 4
          %s139 = sadd.s32 %s22, %s138
          %s140 = smul.addr %s139, 32
          %s141 = scalar_lea.hbm %s0, %s140
          %s142 = sshll.u32 %s134, 4
          %s143 = int_to_ptr.vmem [resolvable:$true] %s142
          %148 = dma.hbm_to_vmem [thread:$0]  %s141, 128, %s143, %s131, 32, 32, 2
        $region20: #{tpu_custom_call.1} parent=15 // pred_fallthru
          _
        // Predicated region
        $region21: #{tpu_custom_call.1} parent=15 // pred_check
          %p149 = pneg %p76
        $region22: #{tpu_custom_call.1} parent=15 // pred_check_branch
          %151 = sbr.rel (%p149) target = $region24
        $region23: #{tpu_custom_call.1} parent=15 // pred_region
          %s152 = sand.u32 %s66, 1
          %s153 = scalar_lea.sflag [#allocation6], %s152
          %s154 = sand.u32 %s66, 1
          %s155 = smul.addr %s154, 8
          %s156 = scalar_lea.vmem [#allocation5], %s155
          %s158 = ssub.s32 128, 128
          %159 = vsyncadd %s153, %s158
          %s160 = smul.addr %s21, 4
          %s161 = sadd.s32 %s22, %s160
          %s162 = smul.addr %s161, 32
          %s163 = scalar_lea.hbm %s1, %s162
          %s164 = sshll.u32 %s156, 4
          %s165 = int_to_ptr.vmem [resolvable:$true] %s164
          %170 = dma.hbm_to_vmem [thread:$0]  %s163, 128, %s165, %s153, 32, 32, 2
        $region24: #{tpu_custom_call.1} parent=15 // pred_fallthru
          _
      $region16: #{tpu_custom_call.1} parent=5 // pred_fallthru
        _
      %p171 = scmp.le.s32.totalorder 1, %s14
      %p172 = scmp.lt.s32.totalorder %s14, 3
      %p173 = pnand %p171, %p172
      %p174 = pneg %p173
      // Predicated region
      $region25: #{tpu_custom_call.1} parent=5 // pred_check
        _
      $region26: #{tpu_custom_call.1} parent=5 // pred_check_branch
        %176 = sbr.rel (%p173) target = $region28
      $region27: #{tpu_custom_call.1} parent=5 // pred_region
        %s177 = ssub.s32 %s14, 1
        %s178 = sand.u32 %s41, 1
        %s179 = scalar_lea.sflag [#allocation4], %s178
        %s180 = sand.u32 %s41, 1
        %s181 = smul.addr %s180, 8
        %s182 = scalar_lea.vmem [#allocation3], %s181
        // Predicated region
        $region29: #{tpu_custom_call.1} parent=27 // pred_check
          %p183 = pneg %p54
        $region30: #{tpu_custom_call.1} parent=27 // pred_check_branch
          %185 = sbr.rel (%p183) target = $region32
        $region31: #{tpu_custom_call.1} parent=27 // pred_region
          %186 = dma.done %s179, 128
        $region32: #{tpu_custom_call.1} parent=27 // pred_fallthru
          _
        %s187 = sand.u32 %s69, 1
        %s188 = scalar_lea.sflag [#allocation6], %s187
        %s189 = sand.u32 %s69, 1
        %s190 = smul.addr %s189, 8
        %s191 = scalar_lea.vmem [#allocation5], %s190
        // Predicated region
        $region33: #{tpu_custom_call.1} parent=27 // pred_check
          %p192 = pneg %p82
        $region34: #{tpu_custom_call.1} parent=27 // pred_check_branch
          %194 = sbr.rel (%p192) target = $region36
        $region35: #{tpu_custom_call.1} parent=27 // pred_region
          %195 = dma.done %s188, 128
        $region36: #{tpu_custom_call.1} parent=27 // pred_fallthru
          _
        %s196 = sand.u32 %s41, 1
        %s197 = scalar_lea.sflag [#allocation4], %s196
        %s198 = sand.u32 %s41, 1
        %s199 = smul.addr %s198, 8
        %s200 = scalar_lea.vmem [#allocation3], %s199
        %p201 = pneg %p54
        %p202 = pneg %p51
        %s203 = sand.u32 %s69, 1
        %s204 = scalar_lea.sflag [#allocation6], %s203
        %s205 = sand.u32 %s69, 1
        %s206 = smul.addr %s205, 8
        %s207 = scalar_lea.vmem [#allocation5], %s206
        %p208 = pneg %p82
        %p209 = pneg %p79
        %p210 = pneg %p108
        %p211 = pneg %p105
        %p212 = scmp.lt.s32.totalorder %s23, 1
        %s213 = scalar_select %p212, %s23, 1
        %s214 = scalar_lea.vmem %s2, %s213
        %p215 = scmp.lt.s32.totalorder %s23, 1
        %s216 = scalar_select %p215, %s23, 1
        %s217 = scalar_lea.vmem %s2, %s216
        %p218 = scmp.eq.s32.totalorder %s24, 0
        // Predicated region
        $region37: #{tpu_custom_call.1} parent=27 // pred_check
          %p219 = pneg %p218
        $region38: #{tpu_custom_call.1} parent=27 // pred_check_branch
          %221 = sbr.rel (%p219) target = $region40
        $region39: #{tpu_custom_call.1} parent=27 // pred_region
          %222 = vst [vmem:[#allocation2] sm:$0x3] 0.0
        $region40: #{tpu_custom_call.1} parent=27 // pred_fallthru
          _
        %v223 = vld [vmem:[%s182] sm:$0x3]
        %v224 = vld [vmem:[%s182 + $0x2] sm:$0x3]
        %v225 = vld [vmem:[%s182 + $0x4] sm:$0x3]
        %v226 = vld [vmem:[%s182 + $0x6] sm:$0x3]
        %v227 = vld [vmem:[%s191] sm:$0x3]
        %v228 = vld [vmem:[%s191 + $0x2] sm:$0x3]
        %v229 = vld [vmem:[%s191 + $0x4] sm:$0x3]
        %v230 = vld [vmem:[%s191 + $0x6] sm:$0x3]
        %v231 = vmul.f32 %v223, %v227
        %v232 = vmul.f32 %v224, %v228
        %v233 = vmul.f32 %v225, %v229
        %v234 = vmul.f32 %v226, %v230
        %vm235 = vcmask 1041408
        %v236 = vsel %vm235, %v231, 0.0
        %v237 = vsel %vm235, %v232, 0.0
        %v238 = vadd.f32 %v236, %v237
        %v239 = vsel %vm235, %v233, 0.0
        %v240 = vadd.f32 %v238, %v239
        %v241 = vsel %vm235, %v234, 0.0
        %v242 = vadd.f32 %v240, %v241
        %v243 = vmul.f32 %v223, %v223
        %v244 = vmul.f32 %v224, %v224
        %v245 = vmul.f32 %v225, %v225
        %v246 = vmul.f32 %v226, %v226
        %v247 = vsel %vm235, %v243, 0.0
        %v248 = vsel %vm235, %v244, 0.0
        %v249 = vadd.f32 %v247, %v248
        %v250 = vsel %vm235, %v245, 0.0
        %v251 = vadd.f32 %v249, %v250
        %v252 = vsel %vm235, %v246, 0.0
        %v253 = vadd.f32 %v251, %v252
        %v254 = vmul.f32 %v227, %v227
        %v255 = vmul.f32 %v228, %v228
        %v256 = vmul.f32 %v229, %v229
        %v257 = vmul.f32 %v230, %v230
        %v258 = vsel %vm235, %v254, 0.0
        %v259 = vsel %vm235, %v255, 0.0
        %v260 = vadd.f32 %v258, %v259
        %v261 = vsel %vm235, %v256, 0.0
        %v262 = vadd.f32 %v260, %v261
        %v263 = vsel %vm235, %v257, 0.0
        %v264 = vadd.f32 %v262, %v263
        %v265 = vmul.f32 %v253, %v264
        %v266 = vmax.f32 %v265, 1e-16
        %v267 = vrsqrt.pop %v266
        %v268 = vmul.f32 %v242, %v267
        %v269 = vld [vmem:[#allocation2] sm:$0x3]
        %v270 = vadd.f32 %v269, %v268
        %271 = vst [vmem:[#allocation2] sm:$0x3] %v270
        // Predicated region
        $region41: #{tpu_custom_call.1} parent=27 // pred_check
          %p272 = pneg %p218
        $region42: #{tpu_custom_call.1} parent=27 // pred_check_branch
          %274 = sbr.rel (%p272) target = $region44
        $region43: #{tpu_custom_call.1} parent=27 // pred_region
          %v275 = vld [vmem:[#allocation2] sm:$0x3]
          %v276 = vsel %vm235, %v275, 0.0
          %277 = vadd.xlane.f32.xlu0 %v276
          %v278 = vpop.xlane.xlu0 %277
          %v279 = vrot.slane %v278, 4
          %v280 = vadd.f32 %v278, %v279
          %v281 = vrot.slane %v280, 2
          %v282 = vadd.f32 %v280, %v281
          %v283 = vrot.slane %v282, 1
          %v284 = vadd.f32 %v282, %v283
          %s285 = vtos %v284
          %v286 = vstv %s285
          %vm287 = vcmask 0
          %288 = vst.msk [vmem:[%s217] sm:$0x1] %vm287, %v286
        $region44: #{tpu_custom_call.1} parent=27 // pred_fallthru
          _
        %p289 = scmp.lt.s32.totalorder %s23, 1
        %s290 = scalar_select %p289, %s23, 1
        %s291 = scalar_lea.vmem %s2, %s290
        // Predicated region
        $region45: #{tpu_custom_call.1} parent=27 // pred_check
          %p292 = pneg %p105
        $region46: #{tpu_custom_call.1} parent=27 // pred_check_branch
          %294 = sbr.rel (%p292) target = $region48
        $region47: #{tpu_custom_call.1} parent=27 // pred_region
          _
        $region48: #{tpu_custom_call.1} parent=27 // pred_fallthru
          _
      $region28: #{tpu_custom_call.1} parent=5 // pred_fallthru
        _
      %p295 = scmp.le.s32.totalorder 2, %s14
      // Predicated region
      $region49: #{tpu_custom_call.1} parent=5 // pred_check
        %p296 = pneg %p295
      $region50: #{tpu_custom_call.1} parent=5 // pred_check_branch
        %298 = sbr.rel (%p296) target = $region52
      $region51: #{tpu_custom_call.1} parent=5 // pred_region
        %s299 = ssub.s32 %s14, 2
        // Predicated region
        $region53: #{tpu_custom_call.1} parent=51 // pred_check
          %p300 = pneg %p111
        $region54: #{tpu_custom_call.1} parent=51 // pred_check_branch
          %302 = sbr.rel (%p300) target = $region56
        $region55: #{tpu_custom_call.1} parent=51 // pred_region
          %p303 = scmp.lt.s32.totalorder %s25, 1
          %s304 = scalar_select %p303, %s25, 1
          %s305 = scalar_lea.vmem %s2, %s304
        $region56: #{tpu_custom_call.1} parent=51 // pred_fallthru
          _
      $region52: #{tpu_custom_call.1} parent=5 // pred_fallthru
        _
    $region6: #{tpu_custom_call.1} parent=1 // loop_footer
      %s18 = sadd.s32 1, %s14
    $region7: #{tpu_custom_call.1} parent=1 // loop_footer_branch
      %13 = sbr.rel target = $region3
    $region8: #{tpu_custom_call.1} parent=1 // loop_exit
      _
    %306 = vsyncpa [#allocation4], 1
    %s307 = scalar_lea.sflag [#allocation4], 1
    %308 = vsyncpa %s307, 1
    %309 = vsyncpa [#allocation6], 1
    %s310 = scalar_lea.sflag [#allocation6], 1
    %311 = vsyncpa %s310, 1

</llo_original>
